<compile_context>
chip_gen: v5e
topology: v5e:2x2
jax: 0.10.0
libtpu: 0.0.40
codegen_flags: <defaults>
</compile_context>

<pallas_src>
import functools
import math

import jax
import jax.numpy as jnp
from jax.experimental import pallas as pl
from jax.experimental.pallas import tpu as pltpu


# ------------------------------ shared in-kernel helpers ------------------------------

def _ln_rows(x, g, b, eps=1e-5):
    """Row-wise LayerNorm of a (rows, D) tile; g/b are (1, D)."""
    mean = jnp.mean(x, axis=-1, keepdims=True)
    var = jnp.mean(jnp.square(x - mean), axis=-1, keepdims=True)
    return (x - mean) * jax.lax.rsqrt(var + eps) * g + b


def _mha_core(q_n, kv, neg_bias, wq, wk, wv, wo, n_heads, d_k):
    """Multi-head attention for one batch element.

    q_n: (M, D) pre-normed queries, kv: (N, D) key/value source, neg_bias: (M, N) additive mask.
    Returns the (M, D) output-projected attention (f32).
    """
    scale = 1.0 / math.sqrt(d_k)
    qp = jnp.dot(q_n, wq, preferred_element_type=jnp.float32) * scale   # scale folded in once
    kp = jnp.dot(kv, wk, preferred_element_type=jnp.float32)
    vp = jnp.dot(kv, wv, preferred_element_type=jnp.float32)
    D = wq.shape[0]
    hd = D // n_heads
    # NOTE: hd is tiny here, so each head matmul badly underutilizes the MXU; at production
    # sizes batch the heads in one dot_general (or pack several heads along the lane axis).
    acc = None
    for h in range(n_heads):                          # static, unrolled
        sl = slice(h * hd, (h + 1) * hd)
        s = jnp.dot(qp[:, sl], kp[:, sl].T, preferred_element_type=jnp.float32)
        s = s + neg_bias                              # masked positions -> -1e30 (finite, no NaN)
        s_max = jnp.max(s, axis=-1, keepdims=True)
        e = jnp.exp(s - s_max)
        # EUP reciprocal + VPU multiply instead of a per-element divide.
        p = e * pl.reciprocal(jnp.sum(e, axis=-1, keepdims=True), approx=False)
        head_o = jnp.dot(p, vp[:, sl], preferred_element_type=jnp.float32)   # (M, hd)
        # Accumulate straight through the matching Wo row-slice -- no concat needed.
        contrib = jnp.dot(head_o, wo[sl, :], preferred_element_type=jnp.float32)
        acc = contrib if acc is None else acc + contrib
    return acc


# --------------------------- standalone LayerNorm (key_val only) ---------------------------

def _layernorm_kernel(x_ref, g_ref, b_ref, o_ref):
    o_ref[...] = _ln_rows(x_ref[...], g_ref[...], b_ref[...]).astype(o_ref.dtype)


def layernorm(x, gamma, beta):
    """LayerNorm over the last axis; all rows collapsed into one dense block."""
    orig = x.shape
    D = orig[-1]
    R = x.size // D
    out = pl.pallas_call(
        _layernorm_kernel,
        out_shape=jax.ShapeDtypeStruct((R, D), x.dtype),
    )(x.reshape(R, D), gamma.reshape(1, D), beta.reshape(1, D))
    return out.reshape(orig)


# ------------------ fused [LayerNorm -> multi-head attention -> residual] ------------------

def _attn_kernel(n_heads, d_k, cross, *refs):
    if cross:
        (x_ref, kv_ref, mask_ref, g_ref, b_ref,
         wq_ref, wk_ref, wv_ref, wo_ref, o_ref) = refs
    else:
        (x_ref, mask_ref, g_ref, b_ref,
         wq_ref, wk_ref, wv_ref, wo_ref, o_ref) = refs
    x = x_ref[0]                                             # (M, D) residual input
    q_n = _ln_rows(x, g_ref[...], b_ref[...])                # fused pre-LayerNorm
    kv = kv_ref[0] if cross else q_n                         # self-attn reuses LN(x) as k/v
    neg_bias = jnp.where(mask_ref[0], -1e30, 0.0)            # (M, N), hoisted out of head loop
    attn = _mha_core(q_n, kv, neg_bias,
                     wq_ref[...], wk_ref[...], wv_ref[...], wo_ref[...],
                     n_heads, d_k)
    o_ref[0] = x + attn.astype(x.dtype)                      # residual add


def attn_residual(x, kv, mask, gamma, beta, wq, wk, wv, wo, *, n_heads, d_k, cross):
    """Fused [LayerNorm -> MHA -> residual-add], gridded over batch.

    cross=False : self-attention, q = k = v = LN(x)   (kv argument is ignored)
    cross=True  : cross-attention, q = LN(x), k = v = kv (already normed)
    """
    B, M, D = x.shape
    N = kv.shape[1] if cross else M
    mask = mask.astype(jnp.bool_)                 # 1 byte/elem mask DMA; bias built in-kernel
    kernel = functools.partial(_attn_kernel, n_heads, d_k, cross)

    in_specs = [pl.BlockSpec((1, M, D), lambda b: (b, 0, 0))]          # x (residual + LN source)
    args = [x]
    if cross:
        in_specs.append(pl.BlockSpec((1, N, D), lambda b: (b, 0, 0)))  # pre-normed k/v source
        args.append(kv)
    in_specs += [
        pl.BlockSpec((1, M, N), lambda b: (b, 0, 0)),                  # bool mask (per batch)
        pl.BlockSpec((1, D), lambda b: (0, 0)),                        # gamma
        pl.BlockSpec((1, D), lambda b: (0, 0)),                        # beta
        pl.BlockSpec((D, D), lambda b: (0, 0)),                        # Wq
        pl.BlockSpec((D, D), lambda b: (0, 0)),                        # Wk
        pl.BlockSpec((D, D), lambda b: (0, 0)),                        # Wv
        pl.BlockSpec((D, D), lambda b: (0, 0)),                        # Wo
    ]
    args += [mask, gamma.reshape(1, D), beta.reshape(1, D), wq, wk, wv, wo]

    return pl.pallas_call(
        kernel,
        out_shape=jax.ShapeDtypeStruct((B, M, D), x.dtype),
        grid=(B,),
        in_specs=in_specs,
        out_specs=pl.BlockSpec((1, M, D), lambda b: (b, 0, 0)),
        compiler_params=pltpu.CompilerParams(dimension_semantics=("parallel",)),
    )(*args)


# ---------------------- fused [LayerNorm -> Linear -> ReLU -> Linear -> residual] ----------------------

def _ffn_kernel(x_ref, g_ref, b_ref, w1_ref, b1_ref, w2_ref, b2_ref, o_ref):
    x = x_ref[...]                                           # (R, D)
    xn = _ln_rows(x, g_ref[...], b_ref[...])                 # fused pre-LayerNorm
    h = jnp.dot(xn, w1_ref[...], preferred_element_type=jnp.float32) + b1_ref[...]
    h = jnp.maximum(h, 0.0)                                  # ReLU
    y = jnp.dot(h, w2_ref[...], preferred_element_type=jnp.float32) + b2_ref[...]
    o_ref[...] = x + y.astype(x.dtype)                       # residual add


def ffn_residual(x, gamma, beta, w1, b1, w2, b2):
    """Fused FFN sub-layer; rows collapsed to (B*S, D) and run as one dense block."""
    B, S, D = x.shape
    R = B * S
    d_ff = w1.shape[1]
    # TODO(synk): at production d_ff, add an 'arbitrary' grid axis over d_ff with an f32 VMEM
    # accumulator (and explicit vmem_limit_bytes) instead of holding W1/W2 as single blocks.
    out = pl.pallas_call(
        _ffn_kernel,
        out_shape=jax.ShapeDtypeStruct((R, D), x.dtype),
    )(x.reshape(R, D), gamma.reshape(1, D), beta.reshape(1, D),
      w1, b1.reshape(1, d_ff), w2, b2.reshape(1, D))
    return out.reshape(B, S, D)


# ------------------------------------- Decoder forward -------------------------------------

def decoder_forward(params, x, key_val, mask, prev, future_mask, *, n_heads, d_k):
    """Pallas implementation of Decoder.forward (prev is None path, eval mode)."""
    assert prev is None  # TODO(synk): prev-state (incremental decoding) branch not implemented

    # (1) masked self-attention sub-layer: LN1 + MHA(future_mask) + residual, fused
    z = attn_residual(x, None, future_mask,
                      params["ln1_g"], params["ln1_b"],
                      params["mha1_wq"], params["mha1_wk"],
                      params["mha1_wv"], params["mha1_wo"],
                      n_heads=n_heads, d_k=d_k, cross=False)

    # normed key_val is both the cross-attention K/V source and a returned output
    key_val_n = layernorm(key_val, params["ln2_g"], params["ln2_b"])

    # (2) cross-attention sub-layer: LN2(z) + MHA(key_val_n, mask) + residual, fused
    z = attn_residual(z, key_val_n, mask,
                      params["ln2_g"], params["ln2_b"],
                      params["mha2_wq"], params["mha2_wk"],
                      params["mha2_wv"], params["mha2_wo"],
                      n_heads=n_heads, d_k=d_k, cross=True)

    # (3) feed-forward sub-layer: LN3 + Linear/ReLU/Linear + residual, fused
    z = ffn_residual(z, params["ln3_g"], params["ln3_b"],
                     params["ff_w1"], params["ff_b1"],
                     params["ff_w2"], params["ff_b2"])
    return z, key_val_n, mask, prev, future_mask


# ------------------------------------ pure-JAX reference ------------------------------------

def _layernorm_ref(x, g, b):
    mean = jnp.mean(x, axis=-1, keepdims=True)
    var = jnp.mean((x - mean) ** 2, axis=-1, keepdims=True)
    return (x - mean) * jax.lax.rsqrt(var + 1e-5) * g + b


def _mha_ref(q, k, v, mask, wq, wk, wv, wo, n_heads, d_k):
    D = q.shape[-1]
    hd = D // n_heads
    qp, kp, vp = q @ wq, k @ wk, v @ wv
    outs = []
    for h in range(n_heads):
        s = jnp.einsum("bmd,bnd->bmn",
                       qp[..., h * hd:(h + 1) * hd], kp[..., h * hd:(h + 1) * hd])
        if mask is not None:
            s = jnp.where(mask, -jnp.inf, s)
        p = jax.nn.softmax(s / math.sqrt(d_k), axis=-1)
        outs.append(jnp.einsum("bmn,bnd->bmd", p, vp[..., h * hd:(h + 1) * hd]))
    return jnp.concatenate(outs, axis=-1) @ wo


def decoder_ref(params, x, key_val, mask, future_mask, *, n_heads, d_k):
    z_norm = _layernorm_ref(x, params["ln1_g"], params["ln1_b"])
    z = x + _mha_ref(z_norm, z_norm, z_norm, future_mask,
                     params["mha1_wq"], params["mha1_wk"],
                     params["mha1_wv"], params["mha1_wo"], n_heads, d_k)
    key_val_n = _layernorm_ref(key_val, params["ln2_g"], params["ln2_b"])
    z = z + _mha_ref(_layernorm_ref(z, params["ln2_g"], params["ln2_b"]),
                     key_val_n, key_val_n, mask,
                     params["mha2_wq"], params["mha2_wk"],
                     params["mha2_wv"], params["mha2_wo"], n_heads, d_k)
    h = jnp.maximum(_layernorm_ref(z, params["ln3_g"], params["ln3_b"]) @ params["ff_w1"]
                    + params["ff_b1"], 0.0)
    z = z + h @ params["ff_w2"] + params["ff_b2"]
    return z, key_val_n


# ------------------------------------------- main -------------------------------------------

def _xavier(key, fan_in, fan_out):
    a = math.sqrt(6.0 / (fan_in + fan_out))
    return jax.random.uniform(key, (fan_in, fan_out), jnp.float32, -a, a)


if __name__ == "__main__":
    d_model, d_ff, n_heads = 32, 64, 4
    d_k = d_model // n_heads
    B, M, N = 2, 8, 8

    key = jax.random.PRNGKey(0)
    ks = jax.random.split(key, 16)

    params = {
        "ln1_g": jnp.ones((d_model,), jnp.float32),
        "ln1_b": jnp.zeros((d_model,), jnp.float32),
        "ln2_g": jnp.ones((d_model,), jnp.float32),
        "ln2_b": jnp.zeros((d_model,), jnp.float32),
        "ln3_g": jnp.ones((d_model,), jnp.float32),
        "ln3_b": jnp.zeros((d_model,), jnp.float32),
        "mha1_wq": _xavier(ks[0], d_model, d_model),
        "mha1_wk": _xavier(ks[1], d_model, d_model),
        "mha1_wv": _xavier(ks[2], d_model, d_model),
        "mha1_wo": _xavier(ks[3], d_model, d_model),
        "mha2_wq": _xavier(ks[4], d_model, d_model),
        "mha2_wk": _xavier(ks[5], d_model, d_model),
        "mha2_wv": _xavier(ks[6], d_model, d_model),
        "mha2_wo": _xavier(ks[7], d_model, d_model),
        "ff_w1": _xavier(ks[8], d_model, d_ff),
        "ff_b1": 0.01 * jax.random.normal(ks[9], (d_ff,), jnp.float32),
        "ff_w2": _xavier(ks[10], d_ff, d_model),
        "ff_b2": 0.01 * jax.random.normal(ks[11], (d_model,), jnp.float32),
    }

    x = jax.random.normal(ks[12], (B, M, d_model), jnp.float32)
    key_val = jax.random.normal(ks[13], (B, N, d_model), jnp.float32)

    # causal future mask (True = masked) and a key-padding mask (last 2 keys masked)
    future_mask = jnp.triu(jnp.ones((M, M), dtype=bool), k=1)
    future_mask = jnp.broadcast_to(future_mask, (B, M, M))
    pad = jnp.arange(N) >= (N - 2)
    mask = jnp.broadcast_to(pad[None, None, :], (B, M, N))

    z, kv_out, mask_out, prev_out, fmask_out = decoder_forward(
        params, x, key_val, mask, None, future_mask, n_heads=n_heads, d_k=d_k)
    jax.block_until_ready(z)
    jax.block_until_ready(kv_out)

    z_ref, kv_ref = decoder_ref(params, x, key_val, mask, future_mask,
                                n_heads=n_heads, d_k=d_k)
    assert z.shape == (B, M, d_model) and kv_out.shape == (B, N, d_model)
    assert jnp.allclose(z, z_ref, atol=1e-4, rtol=1e-4)
    assert jnp.allclose(kv_out, kv_ref, atol=1e-4, rtol=1e-4)

    print("KERNEL_OK")
</pallas_src>

<mosaic_0001>
module attributes {stable_mosaic.version = 11 : i64} {
  func.func @_attn_kernel(%arg0: i32, %arg1: memref<1x8x32xf32, #tpu.memory_space<vmem>>, %arg2: memref<1x8x8xi32, #tpu.memory_space<vmem>>, %arg3: memref<1x32xf32, #tpu.memory_space<vmem>>, %arg4: memref<1x32xf32, #tpu.memory_space<vmem>>, %arg5: memref<32x32xf32, #tpu.memory_space<vmem>>, %arg6: memref<32x32xf32, #tpu.memory_space<vmem>>, %arg7: memref<32x32xf32, #tpu.memory_space<vmem>>, %arg8: memref<32x32xf32, #tpu.memory_space<vmem>>, %arg9: memref<1x8x32xf32, #tpu.memory_space<vmem>>) attributes {dimension_semantics = [#tpu.dimension_semantics<parallel>], iteration_bounds = array<i64: 2>, scalar_prefetch = 0 : i64, scratch_operands = 0 : i64, tpu.core_type = #tpu.core_type<tc>, window_params = [{transform_indices = @transform_0, window_bounds = array<i64: 1, 8, 32>}, {transform_indices = @transform_1, window_bounds = array<i64: 1, 8, 8>}, {pipeline_mode = #tpu.pipeline_mode<synchronous>, transform_indices = @transform_2, window_bounds = array<i64: 1, 32>}, {pipeline_mode = #tpu.pipeline_mode<synchronous>, transform_indices = @transform_3, window_bounds = array<i64: 1, 32>}, {pipeline_mode = #tpu.pipeline_mode<synchronous>, transform_indices = @transform_4, window_bounds = array<i64: 32, 32>}, {pipeline_mode = #tpu.pipeline_mode<synchronous>, transform_indices = @transform_5, window_bounds = array<i64: 32, 32>}, {pipeline_mode = #tpu.pipeline_mode<synchronous>, transform_indices = @transform_6, window_bounds = array<i64: 32, 32>}, {pipeline_mode = #tpu.pipeline_mode<synchronous>, transform_indices = @transform_7, window_bounds = array<i64: 32, 32>}, {transform_indices = @transform_8, window_bounds = array<i64: 1, 8, 32>}]} {
    %c0 = arith.constant 0 : index
    %c0_0 = arith.constant 0 : index
    %c0_1 = arith.constant 0 : index
    %0 = vector.load %arg1[%c0, %c0_0, %c0_1] : memref<1x8x32xf32, #tpu.memory_space<vmem>>, vector<1x8x32xf32>
    %1 = vector.shape_cast %0 : vector<1x8x32xf32> to vector<8x32xf32>
    %c0_2 = arith.constant 0 : index
    %c0_3 = arith.constant 0 : index
    %2 = vector.load %arg3[%c0_2, %c0_3] : memref<1x32xf32, #tpu.memory_space<vmem>>, vector<1x32xf32>
    %c0_4 = arith.constant 0 : index
    %c0_5 = arith.constant 0 : index
    %3 = vector.load %arg4[%c0_4, %c0_5] : memref<1x32xf32, #tpu.memory_space<vmem>>, vector<1x32xf32>
    %cst = arith.constant dense<0.000000e+00> : vector<8xf32>
    %4 = vector.multi_reduction <add>, %1, %cst [1] : vector<8x32xf32> to vector<8xf32>
    %5 = vector.shape_cast %4 : vector<8xf32> to vector<8x1xf32>
    %cst_6 = arith.constant 3.200000e+01 : f32
    %6 = vector.broadcast %cst_6 : f32 to vector<8x1xf32>
    %7 = arith.divf %5, %6 : vector<8x1xf32>
    %8 = vector.broadcast %7 : vector<8x1xf32> to vector<8x32xf32>
    %9 = arith.subf %1, %8 : vector<8x32xf32>
    %10 = arith.mulf %9, %9 : vector<8x32xf32>
    %cst_7 = arith.constant dense<0.000000e+00> : vector<8xf32>
    %11 = vector.multi_reduction <add>, %10, %cst_7 [1] : vector<8x32xf32> to vector<8xf32>
    %12 = vector.shape_cast %11 : vector<8xf32> to vector<8x1xf32>
    %cst_8 = arith.constant 3.200000e+01 : f32
    %13 = vector.broadcast %cst_8 : f32 to vector<8x1xf32>
    %14 = arith.divf %12, %13 : vector<8x1xf32>
    %15 = vector.broadcast %7 : vector<8x1xf32> to vector<8x32xf32>
    %16 = arith.subf %1, %15 : vector<8x32xf32>
    %cst_9 = arith.constant 9.99999974E-6 : f32
    %17 = vector.broadcast %cst_9 : f32 to vector<8x1xf32>
    %18 = arith.addf %14, %17 : vector<8x1xf32>
    %19 = math.rsqrt %18 : vector<8x1xf32>
    %20 = vector.broadcast %19 : vector<8x1xf32> to vector<8x32xf32>
    %21 = arith.mulf %16, %20 : vector<8x32xf32>
    %22 = vector.broadcast %2 : vector<1x32xf32> to vector<8x32xf32>
    %23 = arith.mulf %21, %22 : vector<8x32xf32>
    %24 = vector.broadcast %3 : vector<1x32xf32> to vector<8x32xf32>
    %25 = arith.addf %23, %24 : vector<8x32xf32>
    %c0_10 = arith.constant 0 : index
    %c0_11 = arith.constant 0 : index
    %c0_12 = arith.constant 0 : index
    %26 = vector.load %arg2[%c0_10, %c0_11, %c0_12] : memref<1x8x8xi32, #tpu.memory_space<vmem>>, vector<1x8x8xi32>
    %27 = vector.shape_cast %26 : vector<1x8x8xi32> to vector<8x8xi32>
    %cst_13 = arith.constant dense<0> : vector<8x8xi32>
    %28 = arith.cmpi ne, %27, %cst_13 : vector<8x8xi32>
    %cst_14 = arith.constant -1.000000e+30 : f32
    %cst_15 = arith.constant 0.000000e+00 : f32
    %29 = vector.broadcast %cst_14 : f32 to vector<8x8xf32>
    %30 = vector.broadcast %cst_15 : f32 to vector<8x8xf32>
    %31 = arith.select %28, %29, %30 : vector<8x8xi1>, vector<8x8xf32>
    %c0_16 = arith.constant 0 : index
    %c0_17 = arith.constant 0 : index
    %32 = vector.load %arg5[%c0_16, %c0_17] : memref<32x32xf32, #tpu.memory_space<vmem>>, vector<32x32xf32>
    %c0_18 = arith.constant 0 : index
    %c0_19 = arith.constant 0 : index
    %33 = vector.load %arg6[%c0_18, %c0_19] : memref<32x32xf32, #tpu.memory_space<vmem>>, vector<32x32xf32>
    %c0_20 = arith.constant 0 : index
    %c0_21 = arith.constant 0 : index
    %34 = vector.load %arg7[%c0_20, %c0_21] : memref<32x32xf32, #tpu.memory_space<vmem>>, vector<32x32xf32>
    %c0_22 = arith.constant 0 : index
    %c0_23 = arith.constant 0 : index
    %35 = vector.load %arg8[%c0_22, %c0_23] : memref<32x32xf32, #tpu.memory_space<vmem>>, vector<32x32xf32>
    %cst_24 = arith.constant dense<0.000000e+00> : vector<8x32xf32>
    %36 = tpu.matmul %25, %32, %cst_24 {dimension_numbers = #tpu.dot_dimension_numbers<[1], [0], [0], [1], [0, 0, 1, 1], [], []>} : vector<8x32xf32>, vector<32x32xf32>, vector<8x32xf32> -> vector<8x32xf32>
    %cst_25 = arith.constant 0.353553385 : f32
    %37 = vector.broadcast %cst_25 : f32 to vector<8x32xf32>
    %38 = arith.mulf %36, %37 : vector<8x32xf32>
    %cst_26 = arith.constant dense<0.000000e+00> : vector<8x32xf32>
    %39 = tpu.matmul %25, %33, %cst_26 {dimension_numbers = #tpu.dot_dimension_numbers<[1], [0], [0], [1], [0, 0, 1, 1], [], []>} : vector<8x32xf32>, vector<32x32xf32>, vector<8x32xf32> -> vector<8x32xf32>
    %cst_27 = arith.constant dense<0.000000e+00> : vector<8x32xf32>
    %40 = tpu.matmul %25, %34, %cst_27 {dimension_numbers = #tpu.dot_dimension_numbers<[1], [0], [0], [1], [0, 0, 1, 1], [], []>} : vector<8x32xf32>, vector<32x32xf32>, vector<8x32xf32> -> vector<8x32xf32>
    %41 = vector.extract_strided_slice %38 {offsets = [0, 0], sizes = [8, 8], strides = [1, 1]} : vector<8x32xf32> to vector<8x8xf32>
    %42 = vector.extract_strided_slice %39 {offsets = [0, 0], sizes = [8, 8], strides = [1, 1]} : vector<8x32xf32> to vector<8x8xf32>
    %43 = tpu.transpose %42, [1, 0] : vector<8x8xf32> -> vector<8x8xf32>
    %cst_28 = arith.constant dense<0.000000e+00> : vector<8x8xf32>
    %44 = tpu.matmul %41, %43, %cst_28 {dimension_numbers = #tpu.dot_dimension_numbers<[1], [0], [0], [1], [0, 0, 1, 1], [], []>} : vector<8x8xf32>, vector<8x8xf32>, vector<8x8xf32> -> vector<8x8xf32>
    %45 = arith.addf %44, %31 : vector<8x8xf32>
    %cst_29 = arith.constant dense<0xFF800000> : vector<8xf32>
    %46 = vector.multi_reduction <maximumf>, %45, %cst_29 [1] : vector<8x8xf32> to vector<8xf32>
    %47 = vector.shape_cast %46 : vector<8xf32> to vector<8x1xf32>
    %48 = vector.broadcast %47 : vector<8x1xf32> to vector<8x8xf32>
    %49 = arith.subf %45, %48 : vector<8x8xf32>
    %50 = math.exp %49 : vector<8x8xf32>
    %cst_30 = arith.constant dense<0.000000e+00> : vector<8xf32>
    %51 = vector.multi_reduction <add>, %50, %cst_30 [1] : vector<8x8xf32> to vector<8xf32>
    %52 = vector.shape_cast %51 : vector<8xf32> to vector<8x1xf32>
    %53 = tpu.reciprocal %52 : vector<8x1xf32> -> vector<8x1xf32>
    %54 = vector.broadcast %53 : vector<8x1xf32> to vector<8x8xf32>
    %55 = arith.mulf %50, %54 : vector<8x8xf32>
    %56 = vector.extract_strided_slice %40 {offsets = [0, 0], sizes = [8, 8], strides = [1, 1]} : vector<8x32xf32> to vector<8x8xf32>
    %cst_31 = arith.constant dense<0.000000e+00> : vector<8x8xf32>
    %57 = tpu.matmul %55, %56, %cst_31 {dimension_numbers = #tpu.dot_dimension_numbers<[1], [0], [0], [1], [0, 0, 1, 1], [], []>} : vector<8x8xf32>, vector<8x8xf32>, vector<8x8xf32> -> vector<8x8xf32>
    %58 = vector.extract_strided_slice %35 {offsets = [0, 0], sizes = [8, 32], strides = [1, 1]} : vector<32x32xf32> to vector<8x32xf32>
    %cst_32 = arith.constant dense<0.000000e+00> : vector<8x32xf32>
    %59 = tpu.matmul %57, %58, %cst_32 {dimension_numbers = #tpu.dot_dimension_numbers<[1], [0], [0], [1], [0, 0, 1, 1], [], []>} : vector<8x8xf32>, vector<8x32xf32>, vector<8x32xf32> -> vector<8x32xf32>
    %60 = vector.extract_strided_slice %38 {offsets = [0, 8], sizes = [8, 8], strides = [1, 1]} : vector<8x32xf32> to vector<8x8xf32>
    %61 = vector.extract_strided_slice %39 {offsets = [0, 8], sizes = [8, 8], strides = [1, 1]} : vector<8x32xf32> to vector<8x8xf32>
    %62 = tpu.transpose %61, [1, 0] : vector<8x8xf32> -> vector<8x8xf32>
    %cst_33 = arith.constant dense<0.000000e+00> : vector<8x8xf32>
    %63 = tpu.matmul %60, %62, %cst_33 {dimension_numbers = #tpu.dot_dimension_numbers<[1], [0], [0], [1], [0, 0, 1, 1], [], []>} : vector<8x8xf32>, vector<8x8xf32>, vector<8x8xf32> -> vector<8x8xf32>
    %64 = arith.addf %63, %31 : vector<8x8xf32>
    %cst_34 = arith.constant dense<0xFF800000> : vector<8xf32>
    %65 = vector.multi_reduction <maximumf>, %64, %cst_34 [1] : vector<8x8xf32> to vector<8xf32>
    %66 = vector.shape_cast %65 : vector<8xf32> to vector<8x1xf32>
    %67 = vector.broadcast %66 : vector<8x1xf32> to vector<8x8xf32>
    %68 = arith.subf %64, %67 : vector<8x8xf32>
    %69 = math.exp %68 : vector<8x8xf32>
    %cst_35 = arith.constant dense<0.000000e+00> : vector<8xf32>
    %70 = vector.multi_reduction <add>, %69, %cst_35 [1] : vector<8x8xf32> to vector<8xf32>
    %71 = vector.shape_cast %70 : vector<8xf32> to vector<8x1xf32>
    %72 = tpu.reciprocal %71 : vector<8x1xf32> -> vector<8x1xf32>
    %73 = vector.broadcast %72 : vector<8x1xf32> to vector<8x8xf32>
    %74 = arith.mulf %69, %73 : vector<8x8xf32>
    %75 = vector.extract_strided_slice %40 {offsets = [0, 8], sizes = [8, 8], strides = [1, 1]} : vector<8x32xf32> to vector<8x8xf32>
    %cst_36 = arith.constant dense<0.000000e+00> : vector<8x8xf32>
    %76 = tpu.matmul %74, %75, %cst_36 {dimension_numbers = #tpu.dot_dimension_numbers<[1], [0], [0], [1], [0, 0, 1, 1], [], []>} : vector<8x8xf32>, vector<8x8xf32>, vector<8x8xf32> -> vector<8x8xf32>
    %77 = vector.extract_strided_slice %35 {offsets = [8, 0], sizes = [8, 32], strides = [1, 1]} : vector<32x32xf32> to vector<8x32xf32>
    %cst_37 = arith.constant dense<0.000000e+00> : vector<8x32xf32>
    %78 = tpu.matmul %76, %77, %cst_37 {dimension_numbers = #tpu.dot_dimension_numbers<[1], [0], [0], [1], [0, 0, 1, 1], [], []>} : vector<8x8xf32>, vector<8x32xf32>, vector<8x32xf32> -> vector<8x32xf32>
    %79 = arith.addf %59, %78 : vector<8x32xf32>
    %80 = vector.extract_strided_slice %38 {offsets = [0, 16], sizes = [8, 8], strides = [1, 1]} : vector<8x32xf32> to vector<8x8xf32>
    %81 = vector.extract_strided_slice %39 {offsets = [0, 16], sizes = [8, 8], strides = [1, 1]} : vector<8x32xf32> to vector<8x8xf32>
    %82 = tpu.transpose %81, [1, 0] : vector<8x8xf32> -> vector<8x8xf32>
    %cst_38 = arith.constant dense<0.000000e+00> : vector<8x8xf32>
    %83 = tpu.matmul %80, %82, %cst_38 {dimension_numbers = #tpu.dot_dimension_numbers<[1], [0], [0], [1], [0, 0, 1, 1], [], []>} : vector<8x8xf32>, vector<8x8xf32>, vector<8x8xf32> -> vector<8x8xf32>
    %84 = arith.addf %83, %31 : vector<8x8xf32>
    %cst_39 = arith.constant dense<0xFF800000> : vector<8xf32>
    %85 = vector.multi_reduction <maximumf>, %84, %cst_39 [1] : vector<8x8xf32> to vector<8xf32>
    %86 = vector.shape_cast %85 : vector<8xf32> to vector<8x1xf32>
    %87 = vector.broadcast %86 : vector<8x1xf32> to vector<8x8xf32>
    %88 = arith.subf %84, %87 : vector<8x8xf32>
    %89 = math.exp %88 : vector<8x8xf32>
    %cst_40 = arith.constant dense<0.000000e+00> : vector<8xf32>
    %90 = vector.multi_reduction <add>, %89, %cst_40 [1] : vector<8x8xf32> to vector<8xf32>
    %91 = vector.shape_cast %90 : vector<8xf32> to vector<8x1xf32>
    %92 = tpu.reciprocal %91 : vector<8x1xf32> -> vector<8x1xf32>
    %93 = vector.broadcast %92 : vector<8x1xf32> to vector<8x8xf32>
    %94 = arith.mulf %89, %93 : vector<8x8xf32>
    %95 = vector.extract_strided_slice %40 {offsets = [0, 16], sizes = [8, 8], strides = [1, 1]} : vector<8x32xf32> to vector<8x8xf32>
    %cst_41 = arith.constant dense<0.000000e+00> : vector<8x8xf32>
    %96 = tpu.matmul %94, %95, %cst_41 {dimension_numbers = #tpu.dot_dimension_numbers<[1], [0], [0], [1], [0, 0, 1, 1], [], []>} : vector<8x8xf32>, vector<8x8xf32>, vector<8x8xf32> -> vector<8x8xf32>
    %97 = vector.extract_strided_slice %35 {offsets = [16, 0], sizes = [8, 32], strides = [1, 1]} : vector<32x32xf32> to vector<8x32xf32>
    %cst_42 = arith.constant dense<0.000000e+00> : vector<8x32xf32>
    %98 = tpu.matmul %96, %97, %cst_42 {dimension_numbers = #tpu.dot_dimension_numbers<[1], [0], [0], [1], [0, 0, 1, 1], [], []>} : vector<8x8xf32>, vector<8x32xf32>, vector<8x32xf32> -> vector<8x32xf32>
    %99 = arith.addf %79, %98 : vector<8x32xf32>
    %100 = vector.extract_strided_slice %38 {offsets = [0, 24], sizes = [8, 8], strides = [1, 1]} : vector<8x32xf32> to vector<8x8xf32>
    %101 = vector.extract_strided_slice %39 {offsets = [0, 24], sizes = [8, 8], strides = [1, 1]} : vector<8x32xf32> to vector<8x8xf32>
    %102 = tpu.transpose %101, [1, 0] : vector<8x8xf32> -> vector<8x8xf32>
    %cst_43 = arith.constant dense<0.000000e+00> : vector<8x8xf32>
    %103 = tpu.matmul %100, %102, %cst_43 {dimension_numbers = #tpu.dot_dimension_numbers<[1], [0], [0], [1], [0, 0, 1, 1], [], []>} : vector<8x8xf32>, vector<8x8xf32>, vector<8x8xf32> -> vector<8x8xf32>
    %104 = arith.addf %103, %31 : vector<8x8xf32>
    %cst_44 = arith.constant dense<0xFF800000> : vector<8xf32>
    %105 = vector.multi_reduction <maximumf>, %104, %cst_44 [1] : vector<8x8xf32> to vector<8xf32>
    %106 = vector.shape_cast %105 : vector<8xf32> to vector<8x1xf32>
    %107 = vector.broadcast %106 : vector<8x1xf32> to vector<8x8xf32>
    %108 = arith.subf %104, %107 : vector<8x8xf32>
    %109 = math.exp %108 : vector<8x8xf32>
    %cst_45 = arith.constant dense<0.000000e+00> : vector<8xf32>
    %110 = vector.multi_reduction <add>, %109, %cst_45 [1] : vector<8x8xf32> to vector<8xf32>
    %111 = vector.shape_cast %110 : vector<8xf32> to vector<8x1xf32>
    %112 = tpu.reciprocal %111 : vector<8x1xf32> -> vector<8x1xf32>
    %113 = vector.broadcast %112 : vector<8x1xf32> to vector<8x8xf32>
    %114 = arith.mulf %109, %113 : vector<8x8xf32>
    %115 = vector.extract_strided_slice %40 {offsets = [0, 24], sizes = [8, 8], strides = [1, 1]} : vector<8x32xf32> to vector<8x8xf32>
    %cst_46 = arith.constant dense<0.000000e+00> : vector<8x8xf32>
    %116 = tpu.matmul %114, %115, %cst_46 {dimension_numbers = #tpu.dot_dimension_numbers<[1], [0], [0], [1], [0, 0, 1, 1], [], []>} : vector<8x8xf32>, vector<8x8xf32>, vector<8x8xf32> -> vector<8x8xf32>
    %117 = vector.extract_strided_slice %35 {offsets = [24, 0], sizes = [8, 32], strides = [1, 1]} : vector<32x32xf32> to vector<8x32xf32>
    %cst_47 = arith.constant dense<0.000000e+00> : vector<8x32xf32>
    %118 = tpu.matmul %116, %117, %cst_47 {dimension_numbers = #tpu.dot_dimension_numbers<[1], [0], [0], [1], [0, 0, 1, 1], [], []>} : vector<8x8xf32>, vector<8x32xf32>, vector<8x32xf32> -> vector<8x32xf32>
    %119 = arith.addf %99, %118 : vector<8x32xf32>
    %120 = arith.addf %1, %119 : vector<8x32xf32>
    %c0_48 = arith.constant 0 : index
    %c0_49 = arith.constant 0 : index
    %c0_50 = arith.constant 0 : index
    %121 = vector.load %arg9[%c0_48, %c0_49, %c0_50] : memref<1x8x32xf32, #tpu.memory_space<vmem>>, vector<1x8x32xf32>
    %122 = vector.shape_cast %121 : vector<1x8x32xf32> to vector<8x32xf32>
    %123 = vector.shape_cast %120 : vector<8x32xf32> to vector<1x8x32xf32>
    tpu.vector_store %arg9[%c0_48, %c0_49, %c0_50], %123 {strides = array<i32>} : memref<1x8x32xf32, #tpu.memory_space<vmem>>, vector<1x8x32xf32>,
    return
  }
  func.func @transform_0(%arg0: i32) -> (i32, i32, i32) {
    %c0_i32 = arith.constant 0 : i32
    %c0_i32_0 = arith.constant 0 : i32
    %c0_i32_1 = arith.constant 0 : i32
    return %arg0, %c0_i32, %c0_i32_0 : i32, i32, i32
  }
  func.func @transform_1(%arg0: i32) -> (i32, i32, i32) {
    %c0_i32 = arith.constant 0 : i32
    %c0_i32_0 = arith.constant 0 : i32
    %c0_i32_1 = arith.constant 0 : i32
    return %arg0, %c0_i32, %c0_i32_0 : i32, i32, i32
  }
  func.func @transform_2(%arg0: i32) -> (i32, i32) {
    %c0_i32 = arith.constant 0 : i32
    %c0_i32_0 = arith.constant 0 : i32
    %c0_i32_1 = arith.constant 0 : i32
    return %c0_i32, %c0_i32_0 : i32, i32
  }
  func.func @transform_3(%arg0: i32) -> (i32, i32) {
    %c0_i32 = arith.constant 0 : i32
    %c0_i32_0 = arith.constant 0 : i32
    %c0_i32_1 = arith.constant 0 : i32
    return %c0_i32, %c0_i32_0 : i32, i32
  }
  func.func @transform_4(%arg0: i32) -> (i32, i32) {
    %c0_i32 = arith.constant 0 : i32
    %c0_i32_0 = arith.constant 0 : i32
    %c0_i32_1 = arith.constant 0 : i32
    return %c0_i32, %c0_i32_0 : i32, i32
  }
  func.func @transform_5(%arg0: i32) -> (i32, i32) {
    %c0_i32 = arith.constant 0 : i32
    %c0_i32_0 = arith.constant 0 : i32
    %c0_i32_1 = arith.constant 0 : i32
    return %c0_i32, %c0_i32_0 : i32, i32
  }
  func.func @transform_6(%arg0: i32) -> (i32, i32) {
    %c0_i32 = arith.constant 0 : i32
    %c0_i32_0 = arith.constant 0 : i32
    %c0_i32_1 = arith.constant 0 : i32
    return %c0_i32, %c0_i32_0 : i32, i32
  }
  func.func @transform_7(%arg0: i32) -> (i32, i32) {
    %c0_i32 = arith.constant 0 : i32
    %c0_i32_0 = arith.constant 0 : i32
    %c0_i32_1 = arith.constant 0 : i32
    return %c0_i32, %c0_i32_0 : i32, i32
  }
  func.func @transform_8(%arg0: i32) -> (i32, i32, i32) {
    %c0_i32 = arith.constant 0 : i32
    %c0_i32_0 = arith.constant 0 : i32
    %c0_i32_1 = arith.constant 0 : i32
    return %arg0, %c0_i32, %c0_i32_0 : i32, i32, i32
  }
}

</mosaic_0001>

<llo_original>
// kernel: tpu_custom_call.1
$region0: #{tpu_custom_call.1}
  #allocation0 [shape = 'u32[]', space=smem, size = 0x4, offset = 0x4, fixed_abs, tag = 'smem constant byte address 0x4 - core index']
  #allocation1 [shape = 'u32[72,128]{1,0:T(1,128)}', space=vmem, size = 0x9000, scoped, tag = 'internal scratch']
  %s0 = inlined_call_operand.vmem [shape: f32[2,8,32], index: 0, kind: input, shape index: {}]
  %s1 = inlined_call_operand.vmem [shape: s32[2,8,8], index: 1, kind: input, shape index: {}]
  %s2 = inlined_call_operand.vmem [shape: f32[1,32], index: 2, kind: input, shape index: {}]
  %s3 = inlined_call_operand.vmem [shape: f32[1,32], index: 3, kind: input, shape index: {}]
  %s4 = inlined_call_operand.hbm [shape: f32[32,32], index: 4, kind: input, shape index: {}]
  %s5 = inlined_call_operand.hbm [shape: f32[32,32], index: 5, kind: input, shape index: {}]
  %s6 = inlined_call_operand.hbm [shape: f32[32,32], index: 6, kind: input, shape index: {}]
  %s7 = inlined_call_operand.hbm [shape: f32[32,32], index: 7, kind: input, shape index: {}]
  %s8 = inlined_call_operand.hbm [shape: f32[2,8,32], index: 8, kind: output, shape index: {}]
  %s9 = sld [smem:[#allocation0]]
  $region81: #{tpu_custom_call.1} parent=0
    _
  %s11 = ssub.s32 1, %s9
  %s12 = scalar_select 0, %s11, %s9
  $region1: #{tpu_custom_call.1} parent=0
    #allocation2 [shape = 'u8[16384]{0}', space=vmem, size = 0x4000, scoped, tag = 'input window, operand 4, single buffered']
    #allocation3 [shape = 's32[2]{0}', space=sflag, size = 0x8, scoped, tag = 'scoped memory for tpu_custom_call.1']
    #allocation4 [shape = 's32[2]{0}', space=sflag, size = 0x8, scoped, tag = 'scoped memory for tpu_custom_call.1']
    #allocation5 [shape = 'u8[16384]{0}', space=vmem, size = 0x4000, scoped, tag = 'input window, operand 5, single buffered']
    #allocation6 [shape = 's32[1]{0}', space=sflag, size = 0x4, scoped, tag = 'scoped memory for tpu_custom_call.1']
    #allocation7 [shape = 'u8[16384]{0}', space=vmem, size = 0x4000, scoped, tag = 'input window, operand 6, single buffered']
    #allocation8 [shape = 'u8[16384]{0}', space=vmem, size = 0x4000, scoped, tag = 'input window, operand 7, single buffered']
    #allocation9 [shape = 's32[1]{0}', space=sflag, size = 0x4, scoped, tag = 'scoped memory for tpu_custom_call.1']
    #allocation10 [shape = 'u8[8192]{0}', space=vmem, size = 0x2000, scoped, tag = 'output window, operand 0']
    %13 = vsyncpa [#allocation3], 0
    %14 = vsyncpa [#allocation6], 0
    %15 = vsyncpa [#allocation9], 0
    %16 = vsyncpa [#allocation4], 0
    %s17 = scalar_lea.sflag [#allocation4], 1
    %18 = vsyncpa %s17, 0
    loop: start=0, step=1, limit=4
    $region2: #{tpu_custom_call.1} parent=1 // loop_pre_header
      _
    $region3: #{tpu_custom_call.1} parent=1 // loop_header
      %s20 = sphi 0, %s24
      %p21 = scmp.ge.s32.totalorder %s20, 4
      %s30 = sphi 0, %s32
      %s33 = sphi 0, %s30
      %s34 = sphi 0, %s33
      %s50 = sphi 0, %s34
      %s56 = sphi 0, %s58
      %s59 = sphi 0, %s56
      %s60 = sphi 0, %s59
      %s76 = sphi 0, %s60
      %s80 = sphi 0, %s80
      %s82 = sphi 0, %s80
      %s83 = sphi 0, %s82
      %s97 = sphi 0, %s83
      %s101 = sphi 0, %s101
      %s103 = sphi 0, %s101
      %s104 = sphi 0, %s103
      %s118 = sphi 0, %s104
      %s122 = sphi 0, %s122
      %s124 = sphi 0, %s122
      %s125 = sphi 0, %s124
      %s139 = sphi 0, %s125
      %s143 = sphi 0, %s143
      %s145 = sphi 0, %s143
      %s146 = sphi 0, %s145
      %s160 = sphi 0, %s146
      %s164 = sphi 0, %s164
      %s166 = sphi 0, %s164
      %s167 = sphi 0, %s166
      %s181 = sphi 0, %s167
      %s185 = sphi 0, %s185
      %s187 = sphi 0, %s185
      %s188 = sphi 0, %s187
      %s202 = sphi 0, %s188
      %s208 = sphi 0, %s210
      %s211 = sphi 0, %s208
      %s212 = sphi 0, %s211
      %s228 = sphi 0, %s212
    $region4: #{tpu_custom_call.1} parent=1 // loop_header_branch
      %23 = sbr.rel (%p21) target = $region8
    $region5: #{tpu_custom_call.1} parent=1 // loop_body
      %s25 = ssub.s32 %s20, 1
      %s26 = ssub.s32 %s20, 2
      %s27 = sadd.s32 %s20, 1
      %s28 = ssub.s32 %s20, %s27
      %p29 = scmp.eq.s32.totalorder %s28, 0
      %s31 = sadd.s32 %s30, 1
      %s32 = scalar_select %p29, %s30, %s31
      %p35 = pneg %p29
      %p36 = scmp.eq.s32.totalorder %s20, 1
      %p37 = por %p35, %p36
      %p38 = scmp.ne.s32.totalorder %s30, %s33
      %p39 = scmp.eq.s32.totalorder %s20, 0
      %p40 = por %p38, %p39
      %p41 = scmp.ne.s32.totalorder %s30, %s33
      %p42 = scmp.eq.s32.totalorder %s25, 1
      %p43 = por %p41, %p42
      %p44 = scmp.ne.s32.totalorder %s33, %s34
      %p45 = scmp.eq.s32.totalorder %s25, 0
      %p46 = por %p44, %p45
      %p47 = scmp.ne.s32.totalorder %s33, %s34
      %p48 = scmp.eq.s32.totalorder %s26, 1
      %p49 = por %p47, %p48
      %p51 = scmp.ne.s32.totalorder %s34, %s50
      %p52 = scmp.eq.s32.totalorder %s26, 0
      %p53 = por %p51, %p52
      %s54 = ssub.s32 %s20, %s27
      %p55 = scmp.eq.s32.totalorder %s54, 0
      %s57 = sadd.s32 %s56, 1
      %s58 = scalar_select %p55, %s56, %s57
      %p61 = pneg %p55
      %p62 = scmp.eq.s32.totalorder %s20, 1
      %p63 = por %p61, %p62
      %p64 = scmp.ne.s32.totalorder %s56, %s59
      %p65 = scmp.eq.s32.totalorder %s20, 0
      %p66 = por %p64, %p65
      %p67 = scmp.ne.s32.totalorder %s56, %s59
      %p68 = scmp.eq.s32.totalorder %s25, 1
      %p69 = por %p67, %p68
      %p70 = scmp.ne.s32.totalorder %s59, %s60
      %p71 = scmp.eq.s32.totalorder %s25, 0
      %p72 = por %p70, %p71
      %p73 = scmp.ne.s32.totalorder %s59, %s60
      %p74 = scmp.eq.s32.totalorder %s26, 1
      %p75 = por %p73, %p74
      %p77 = scmp.ne.s32.totalorder %s60, %s76
      %p78 = scmp.eq.s32.totalorder %s26, 0
      %p79 = por %p77, %p78
      %s81 = sadd.s32 %s80, 1
      %p84 = scmp.eq.s32.totalorder %s20, 1
      %p85 = scmp.ne.s32.totalorder %s80, %s82
      %p86 = scmp.eq.s32.totalorder %s20, 0
      %p87 = por %p85, %p86
      %p88 = scmp.ne.s32.totalorder %s80, %s82
      %p89 = scmp.eq.s32.totalorder %s25, 1
      %p90 = por %p88, %p89
      %p91 = scmp.ne.s32.totalorder %s82, %s83
      %p92 = scmp.eq.s32.totalorder %s25, 0
      %p93 = por %p91, %p92
      %p94 = scmp.ne.s32.totalorder %s82, %s83
      %p95 = scmp.eq.s32.totalorder %s26, 1
      %p96 = por %p94, %p95
      %p98 = scmp.ne.s32.totalorder %s83, %s97
      %p99 = scmp.eq.s32.totalorder %s26, 0
      %p100 = por %p98, %p99
      %s102 = sadd.s32 %s101, 1
      %p105 = scmp.eq.s32.totalorder %s20, 1
      %p106 = scmp.ne.s32.totalorder %s101, %s103
      %p107 = scmp.eq.s32.totalorder %s20, 0
      %p108 = por %p106, %p107
      %p109 = scmp.ne.s32.totalorder %s101, %s103
      %p110 = scmp.eq.s32.totalorder %s25, 1
      %p111 = por %p109, %p110
      %p112 = scmp.ne.s32.totalorder %s103, %s104
      %p113 = scmp.eq.s32.totalorder %s25, 0
      %p114 = por %p112, %p113
      %p115 = scmp.ne.s32.totalorder %s103, %s104
      %p116 = scmp.eq.s32.totalorder %s26, 1
      %p117 = por %p115, %p116
      %p119 = scmp.ne.s32.totalorder %s104, %s118
      %p120 = scmp.eq.s32.totalorder %s26, 0
      %p121 = por %p119, %p120
      %s123 = sadd.s32 %s122, 1
      %p126 = scmp.eq.s32.totalorder %s20, 1
      %p127 = scmp.ne.s32.totalorder %s122, %s124
      %p128 = scmp.eq.s32.totalorder %s20, 0
      %p129 = por %p127, %p128
      %p130 = scmp.ne.s32.totalorder %s122, %s124
      %p131 = scmp.eq.s32.totalorder %s25, 1
      %p132 = por %p130, %p131
      %p133 = scmp.ne.s32.totalorder %s124, %s125
      %p134 = scmp.eq.s32.totalorder %s25, 0
      %p135 = por %p133, %p134
      %p136 = scmp.ne.s32.totalorder %s124, %s125
      %p137 = scmp.eq.s32.totalorder %s26, 1
      %p138 = por %p136, %p137
      %p140 = scmp.ne.s32.totalorder %s125, %s139
      %p141 = scmp.eq.s32.totalorder %s26, 0
      %p142 = por %p140, %p141
      %s144 = sadd.s32 %s143, 1
      %p147 = scmp.eq.s32.totalorder %s20, 1
      %p148 = scmp.ne.s32.totalorder %s143, %s145
      %p149 = scmp.eq.s32.totalorder %s20, 0
      %p150 = por %p148, %p149
      %p151 = scmp.ne.s32.totalorder %s143, %s145
      %p152 = scmp.eq.s32.totalorder %s25, 1
      %p153 = por %p151, %p152
      %p154 = scmp.ne.s32.totalorder %s145, %s146
      %p155 = scmp.eq.s32.totalorder %s25, 0
      %p156 = por %p154, %p155
      %p157 = scmp.ne.s32.totalorder %s145, %s146
      %p158 = scmp.eq.s32.totalorder %s26, 1
      %p159 = por %p157, %p158
      %p161 = scmp.ne.s32.totalorder %s146, %s160
      %p162 = scmp.eq.s32.totalorder %s26, 0
      %p163 = por %p161, %p162
      %s165 = sadd.s32 %s164, 1
      %p168 = scmp.eq.s32.totalorder %s20, 1
      %p169 = scmp.ne.s32.totalorder %s164, %s166
      %p170 = scmp.eq.s32.totalorder %s20, 0
      %p171 = por %p169, %p170
      %p172 = scmp.ne.s32.totalorder %s164, %s166
      %p173 = scmp.eq.s32.totalorder %s25, 1
      %p174 = por %p172, %p173
      %p175 = scmp.ne.s32.totalorder %s166, %s167
      %p176 = scmp.eq.s32.totalorder %s25, 0
      %p177 = por %p175, %p176
      %p178 = scmp.ne.s32.totalorder %s166, %s167
      %p179 = scmp.eq.s32.totalorder %s26, 1
      %p180 = por %p178, %p179
      %p182 = scmp.ne.s32.totalorder %s167, %s181
      %p183 = scmp.eq.s32.totalorder %s26, 0
      %p184 = por %p182, %p183
      %s186 = sadd.s32 %s185, 1
      %p189 = scmp.eq.s32.totalorder %s20, 1
      %p190 = scmp.ne.s32.totalorder %s185, %s187
      %p191 = scmp.eq.s32.totalorder %s20, 0
      %p192 = por %p190, %p191
      %p193 = scmp.ne.s32.totalorder %s185, %s187
      %p194 = scmp.eq.s32.totalorder %s25, 1
      %p195 = por %p193, %p194
      %p196 = scmp.ne.s32.totalorder %s187, %s188
      %p197 = scmp.eq.s32.totalorder %s25, 0
      %p198 = por %p196, %p197
      %p199 = scmp.ne.s32.totalorder %s187, %s188
      %p200 = scmp.eq.s32.totalorder %s26, 1
      %p201 = por %p199, %p200
      %p203 = scmp.ne.s32.totalorder %s188, %s202
      %p204 = scmp.eq.s32.totalorder %s26, 0
      %p205 = por %p203, %p204
      %s206 = ssub.s32 %s20, %s27
      %p207 = scmp.eq.s32.totalorder %s206, 0
      %s209 = sadd.s32 %s208, 1
      %s210 = scalar_select %p207, %s208, %s209
      %p213 = pneg %p207
      %p214 = scmp.eq.s32.totalorder %s20, 1
      %p215 = por %p213, %p214
      %p216 = scmp.ne.s32.totalorder %s208, %s211
      %p217 = scmp.eq.s32.totalorder %s20, 0
      %p218 = por %p216, %p217
      %p219 = scmp.ne.s32.totalorder %s208, %s211
      %p220 = scmp.eq.s32.totalorder %s25, 1
      %p221 = por %p219, %p220
      %p222 = scmp.ne.s32.totalorder %s211, %s212
      %p223 = scmp.eq.s32.totalorder %s25, 0
      %p224 = por %p222, %p223
      %p225 = scmp.ne.s32.totalorder %s211, %s212
      %p226 = scmp.eq.s32.totalorder %s26, 1
      %p227 = por %p225, %p226
      %p229 = scmp.ne.s32.totalorder %s212, %s228
      %p230 = scmp.eq.s32.totalorder %s26, 0
      %p231 = por %p229, %p230
      %p232 = scmp.le.s32.totalorder 1, %s20
      %p233 = scmp.lt.s32.totalorder %s20, 3
      %p234 = pnand %p232, %p233
      %p235 = pneg %p234
      // Predicated region
      $region9: #{tpu_custom_call.1} parent=5 // pred_check
        _
      $region10: #{tpu_custom_call.1} parent=5 // pred_check_branch
        %237 = sbr.rel (%p234) target = $region12
      $region11: #{tpu_custom_call.1} parent=5 // pred_region
        %s238 = ssub.s32 %s20, 1
        // Predicated region
        $region13: #{tpu_custom_call.1} parent=11 // pred_check
          %p239 = pneg %p93
        $region14: #{tpu_custom_call.1} parent=11 // pred_check_branch
          %241 = sbr.rel (%p239) target = $region16
        $region15: #{tpu_custom_call.1} parent=11 // pred_region
          _
        $region16: #{tpu_custom_call.1} parent=11 // pred_fallthru
          _
        // Predicated region
        $region17: #{tpu_custom_call.1} parent=11 // pred_check
          %p242 = pneg %p114
        $region18: #{tpu_custom_call.1} parent=11 // pred_check_branch
          %244 = sbr.rel (%p242) target = $region20
        $region19: #{tpu_custom_call.1} parent=11 // pred_region
          _
        $region20: #{tpu_custom_call.1} parent=11 // pred_fallthru
          _
        // Predicated region
        $region21: #{tpu_custom_call.1} parent=11 // pred_check
          %p245 = pneg %p135
        $region22: #{tpu_custom_call.1} parent=11 // pred_check_branch
          %247 = sbr.rel (%p245) target = $region24
        $region23: #{tpu_custom_call.1} parent=11 // pred_region
          %249 = vsyncadd [#allocation3], 0
          %s250 = sshll.u32 %s4, 4
          %s251 = int_to_ptr.hbm [resolvable:$true] %s250
          %s252 = sshll.u32 [#allocation2], 4
          %s253 = int_to_ptr.vmem [resolvable:$true] %s252
          %258 = dma.hbm_to_vmem [thread:$0]  %s251, 512, %s253, [#allocation3], 128, 128, 8
        $region24: #{tpu_custom_call.1} parent=11 // pred_fallthru
          _
        // Predicated region
        $region25: #{tpu_custom_call.1} parent=11 // pred_check
          %p259 = pneg %p156
        $region26: #{tpu_custom_call.1} parent=11 // pred_check_branch
          %261 = sbr.rel (%p259) target = $region28
        $region27: #{tpu_custom_call.1} parent=11 // pred_region
          %263 = vsyncadd [#allocation6], 0
          %s264 = sshll.u32 %s5, 4
          %s265 = int_to_ptr.hbm [resolvable:$true] %s264
          %s266 = sshll.u32 [#allocation5], 4
          %s267 = int_to_ptr.vmem [resolvable:$true] %s266
          %272 = dma.hbm_to_vmem [thread:$0]  %s265, 512, %s267, [#allocation6], 128, 128, 8
        $region28: #{tpu_custom_call.1} parent=11 // pred_fallthru
          _
        // Predicated region
        $region29: #{tpu_custom_call.1} parent=11 // pred_check
          %p273 = pneg %p177
        $region30: #{tpu_custom_call.1} parent=11 // pred_check_branch
          %275 = sbr.rel (%p273) target = $region32
        $region31: #{tpu_custom_call.1} parent=11 // pred_region
          %277 = vsyncadd [#allocation6], 0
          %s278 = sshll.u32 %s6, 4
          %s279 = int_to_ptr.hbm [resolvable:$true] %s278
          %s280 = sshll.u32 [#allocation7], 4
          %s281 = int_to_ptr.vmem [resolvable:$true] %s280
          %286 = dma.hbm_to_vmem [thread:$0]  %s279, 512, %s281, [#allocation6], 128, 128, 8
        $region32: #{tpu_custom_call.1} parent=11 // pred_fallthru
          _
        // Predicated region
        $region33: #{tpu_custom_call.1} parent=11 // pred_check
          %p287 = pneg %p198
        $region34: #{tpu_custom_call.1} parent=11 // pred_check_branch
          %289 = sbr.rel (%p287) target = $region36
        $region35: #{tpu_custom_call.1} parent=11 // pred_region
          %291 = vsyncadd [#allocation9], 0
          %s292 = sshll.u32 %s7, 4
          %s293 = int_to_ptr.hbm [resolvable:$true] %s292
          %s294 = sshll.u32 [#allocation8], 4
          %s295 = int_to_ptr.vmem [resolvable:$true] %s294
          %300 = dma.hbm_to_vmem [thread:$0]  %s293, 512, %s295, [#allocation9], 128, 128, 8
        $region36: #{tpu_custom_call.1} parent=11 // pred_fallthru
          _
      $region12: #{tpu_custom_call.1} parent=5 // pred_fallthru
        _
      %p301 = scmp.lt.s32.totalorder %s20, 2
      // Predicated region
      $region37: #{tpu_custom_call.1} parent=5 // pred_check
        %p302 = pneg %p301
      $region38: #{tpu_custom_call.1} parent=5 // pred_check_branch
        %304 = sbr.rel (%p302) target = $region40
      $region39: #{tpu_custom_call.1} parent=5 // pred_region
        // Predicated region
        $region41: #{tpu_custom_call.1} parent=39 // pred_check
          %p305 = pneg %p40
        $region42: #{tpu_custom_call.1} parent=39 // pred_check_branch
          %307 = sbr.rel (%p305) target = $region44
        $region43: #{tpu_custom_call.1} parent=39 // pred_region
          %p308 = scmp.lt.s32.totalorder %s20, 1
          %s309 = scalar_select %p308, %s20, 1
          %s310 = smul.addr %s309, 8
          %s311 = scalar_lea.vmem %s0, %s310
        $region44: #{tpu_custom_call.1} parent=39 // pred_fallthru
          _
        // Predicated region
        $region45: #{tpu_custom_call.1} parent=39 // pred_check
          %p312 = pneg %p66
        $region46: #{tpu_custom_call.1} parent=39 // pred_check_branch
          %314 = sbr.rel (%p312) target = $region48
        $region47: #{tpu_custom_call.1} parent=39 // pred_region
          %p315 = scmp.lt.s32.totalorder %s20, 1
          %s316 = scalar_select %p315, %s20, 1
          %s317 = smul.addr %s316, 8
          %s318 = scalar_lea.vmem %s1, %s317
        $region48: #{tpu_custom_call.1} parent=39 // pred_fallthru
          _
      $region40: #{tpu_custom_call.1} parent=5 // pred_fallthru
        _
      %p319 = scmp.le.s32.totalorder 1, %s20
      %p320 = scmp.lt.s32.totalorder %s20, 3
      %p321 = pnand %p319, %p320
      %p322 = pneg %p321
      // Predicated region
      $region49: #{tpu_custom_call.1} parent=5 // pred_check
        _
      $region50: #{tpu_custom_call.1} parent=5 // pred_check_branch
        %324 = sbr.rel (%p321) target = $region52
      $region51: #{tpu_custom_call.1} parent=5 // pred_region
        %s325 = ssub.s32 %s20, 1
        // Predicated region
        $region53: #{tpu_custom_call.1} parent=51 // pred_check
          %p326 = pneg %p135
        $region54: #{tpu_custom_call.1} parent=51 // pred_check_branch
          %328 = sbr.rel (%p326) target = $region56
        $region55: #{tpu_custom_call.1} parent=51 // pred_region
          %330 = dma.done [#allocation3], 512
        $region56: #{tpu_custom_call.1} parent=51 // pred_fallthru
          _
        // Predicated region
        $region57: #{tpu_custom_call.1} parent=51 // pred_check
          %p331 = pneg %p156
        $region58: #{tpu_custom_call.1} parent=51 // pred_check_branch
          %333 = sbr.rel (%p331) target = $region60
        $region59: #{tpu_custom_call.1} parent=51 // pred_region
          %335 = dma.done [#allocation6], 512
        $region60: #{tpu_custom_call.1} parent=51 // pred_fallthru
          _
        // Predicated region
        $region61: #{tpu_custom_call.1} parent=51 // pred_check
          %p336 = pneg %p177
        $region62: #{tpu_custom_call.1} parent=51 // pred_check_branch
          %338 = sbr.rel (%p336) target = $region64
        $region63: #{tpu_custom_call.1} parent=51 // pred_region
          %340 = dma.done [#allocation6], 512
        $region64: #{tpu_custom_call.1} parent=51 // pred_fallthru
          _
        // Predicated region
        $region65: #{tpu_custom_call.1} parent=51 // pred_check
          %p341 = pneg %p198
        $region66: #{tpu_custom_call.1} parent=51 // pred_check_branch
          %343 = sbr.rel (%p341) target = $region68
        $region67: #{tpu_custom_call.1} parent=51 // pred_region
          %345 = dma.done [#allocation9], 512
        $region68: #{tpu_custom_call.1} parent=51 // pred_fallthru
          _
        %p346 = scmp.lt.s32.totalorder %s25, 1
        %s347 = scalar_select %p346, %s25, 1
        %s348 = smul.addr %s347, 8
        %s349 = scalar_lea.vmem %s0, %s348
        %p350 = pneg %p46
        %p351 = pneg %p43
        %p352 = scmp.lt.s32.totalorder %s25, 1
        %s353 = scalar_select %p352, %s25, 1
        %s354 = smul.addr %s353, 8
        %s355 = scalar_lea.vmem %s1, %s354
        %p356 = pneg %p72
        %p357 = pneg %p69
        %p358 = pneg %p93
        %p359 = pneg %p90
        %p360 = pneg %p114
        %p361 = pneg %p111
        %p362 = pneg %p135
        %p363 = pneg %p132
        %p364 = pneg %p156
        %p365 = pneg %p153
        %p366 = pneg %p177
        %p367 = pneg %p174
        %p368 = pneg %p198
        %p369 = pneg %p195
        %p370 = pneg %p224
        %p371 = pneg %p221
        %s372 = sand.u32 %s211, 1
        %s373 = scalar_lea.sflag [#allocation4], %s372
        %s374 = sand.u32 %s211, 1
        %s375 = smul.addr %s374, 8
        %s376 = scalar_lea.vmem [#allocation10], %s375
        %p377 = scmp.lt.s32.totalorder %s25, 1
        %s378 = scalar_select %p377, %s25, 1
        %s379 = smul.addr %s378, 8
        %s380 = scalar_lea.vmem %s0, %s379
        %p381 = scmp.lt.s32.totalorder %s25, 1
        %s382 = scalar_select %p381, %s25, 1
        %s383 = smul.addr %s382, 8
        %s384 = scalar_lea.vmem %s1, %s383
        %v385 = vld [vmem:[%s380] sm:$0xff]
        %v386 = vld [vmem:[%s2] sm:$0x1]
        %v387 = vld [vmem:[%s3] sm:$0x1]
        %vm388 = vcmask 261120
        %v389 = vsel %vm388, %v385, 0.0
        %390 = vadd.xlane.f32.xlu0 %v389
        %v391 = vpop.xlane.xlu0 %390
        %v392 = vrcp.pop 32.0
        %v393 = vmul.f32 32.0, %v392
        %v394 = vsub.f32 1.0, %v393
        %v395 = vmul.f32 %v392, %v394
        %v396 = vadd.f32 %v392, %v395
        %vm397 = vweird.f32 %v392
        %v398 = vsel %vm397, %v392, %v396
        %v399 = vmul.f32 %v391, %v398
        %v400 = vsub.f32 %v385, %v399
        %v401 = vmul.f32 %v400, %v400
        %v402 = vsel %vm388, %v401, 0.0
        %403 = vadd.xlane.f32.xlu0 %v402
        %v404 = vpop.xlane.xlu0 %403
        %v405 = vmul.f32 %v404, %v398
        %v406 = vadd.f32 %v405, 1e-05
        %v407 = vrsqrt.pop %v406
        %v408 = vmul.f32 %v407, %v406
        %v409 = vmul.f32 %v408, %v407
        %v410 = vmul.f32 0.5, %v409
        %v411 = vsub.f32 1.5, %v410
        %v412 = vmul.f32 %v407, %v411
        %vm413 = vweird.f32 %v406
        %vm414 = vweird.f32 %v407
        %vm415 = vmor %vm413, %vm414
        %v416 = vsel %vm415, %v407, %v412
        %v417 = vmul.f32 %v400, %v416
        %v419 = vperm.slane %v386, 0
        %v421 = vmul.f32 %v417, %v419
        %v423 = vperm.slane %v387, 0
        %v425 = vadd.f32 %v421, %v423
        %v426 = vld [vmem:[%s384] sm:$0xff]
        %vm427 = vcmp.ne.s32.totalorder %v426, 0
        %v428 = vsel %vm427, -1e+30, 0.0
        %v429 = vld [vmem:[#allocation2] sm:$0xff]
        %v430 = vld [vmem:[#allocation2 + $0x8] sm:$0xff]
        %v431 = vld [vmem:[#allocation2 + $0x10] sm:$0xff]
        %v432 = vld [vmem:[#allocation2 + $0x18] sm:$0xff]
        %v433 = vld [vmem:[#allocation5] sm:$0xff]
        %v434 = vld [vmem:[#allocation5 + $0x8] sm:$0xff]
        %v435 = vld [vmem:[#allocation5 + $0x10] sm:$0xff]
        %v436 = vld [vmem:[#allocation5 + $0x18] sm:$0xff]
        %v437 = vld [vmem:[#allocation7] sm:$0xff]
        %v438 = vld [vmem:[#allocation7 + $0x8] sm:$0xff]
        %v439 = vld [vmem:[#allocation7 + $0x10] sm:$0xff]
        %v440 = vld [vmem:[#allocation7 + $0x18] sm:$0xff]
        %v441 = vld [vmem:[#allocation8] sm:$0xff]
        %v442 = vld [vmem:[#allocation8 + $0x8] sm:$0xff]
        %v443 = vld [vmem:[#allocation8 + $0x10] sm:$0xff]
        %v444 = vld [vmem:[#allocation8 + $0x18] sm:$0xff]
        %v446 = vsel %vm388, %v425, 0
        %448 = vmatpush.msra.mxu0 0.0
        %449 = vmatpush.msra.mxu0 0.0
        %450 = vmatpush.msra.mxu0 0.0
        %451 = vmatpush.msra.mxu0 0.0
        %452 = vmatpush.msra.mxu0 0.0
        %453 = vmatpush.msra.mxu0 0.0
        %454 = vmatpush.msra.mxu0 0.0
        %455 = vmatpush.msra.mxu0 0.0
        %456 = vmatpush.msra.mxu0 0.0
        %457 = vmatpush.msra.mxu0 0.0
        %458 = vmatpush.msra.mxu0 0.0
        %459 = vmatpush.msra.mxu0 0.0
        %460 = vmatpush.msra.mxu0 %v432
        %461 = vmatpush.msra.mxu0 %v431
        %462 = vmatpush.msra.mxu0 %v430
        %463 = vmatpush.msra.mxu0 %v429
        %464 = vmatmul.f32.gmra.mxu0 %v446
        %v465 = vpop.f32.mrf.mxu0
        %v466 = vadd.f32 0.0, %v465
        %467 = vdwg.mxu0
        %v468 = vmul.f32 %v466, 0.35355338
        %469 = vmatpush.msra.mxu0 0.0
        %470 = vmatpush.msra.mxu0 0.0
        %471 = vmatpush.msra.mxu0 0.0
        %472 = vmatpush.msra.mxu0 0.0
        %473 = vmatpush.msra.mxu0 0.0
        %474 = vmatpush.msra.mxu0 0.0
        %475 = vmatpush.msra.mxu0 0.0
        %476 = vmatpush.msra.mxu0 0.0
        %477 = vmatpush.msra.mxu0 0.0
        %478 = vmatpush.msra.mxu0 0.0
        %479 = vmatpush.msra.mxu0 0.0
        %480 = vmatpush.msra.mxu0 0.0
        %481 = vmatpush.msra.mxu0 %v436
        %482 = vmatpush.msra.mxu0 %v435
        %483 = vmatpush.msra.mxu0 %v434
        %484 = vmatpush.msra.mxu0 %v433
        %485 = vmatmul.f32.gmra.mxu0 %v446
        %v486 = vpop.f32.mrf.mxu0
        %v487 = vadd.f32 0.0, %v486
        %488 = vdwg.mxu0
        %489 = vmatpush.msra.mxu0 0.0
        %490 = vmatpush.msra.mxu0 0.0
        %491 = vmatpush.msra.mxu0 0.0
        %492 = vmatpush.msra.mxu0 0.0
        %493 = vmatpush.msra.mxu0 0.0
        %494 = vmatpush.msra.mxu0 0.0
        %495 = vmatpush.msra.mxu0 0.0
        %496 = vmatpush.msra.mxu0 0.0
        %497 = vmatpush.msra.mxu0 0.0
        %498 = vmatpush.msra.mxu0 0.0
        %499 = vmatpush.msra.mxu0 0.0
        %500 = vmatpush.msra.mxu0 0.0
        %501 = vmatpush.msra.mxu0 %v440
        %502 = vmatpush.msra.mxu0 %v439
        %503 = vmatpush.msra.mxu0 %v438
        %504 = vmatpush.msra.mxu0 %v437
        %505 = vmatmul.f32.gmra.mxu0 %v446
        %v506 = vpop.f32.mrf.mxu0
        %v507 = vadd.f32 0.0, %v506
        %508 = vdwg.mxu0
        %vm509 = vcmask 64512
        %v511 = vsel %vm509, %v468, 0
        %v514 = vsel %vm509, %v487, 0
        %516 = vmatpush.xpose.msra.mxu0 0.0
        %517 = vmatpush.xpose.msra.mxu0 0.0
        %518 = vmatpush.xpose.msra.mxu0 0.0
        %519 = vmatpush.xpose.msra.mxu0 0.0
        %520 = vmatpush.xpose.msra.mxu0 0.0
        %521 = vmatpush.xpose.msra.mxu0 0.0
        %522 = vmatpush.xpose.msra.mxu0 0.0
        %523 = vmatpush.xpose.msra.mxu0 0.0
        %524 = vmatpush.xpose.msra.mxu0 0.0
        %525 = vmatpush.xpose.msra.mxu0 0.0
        %526 = vmatpush.xpose.msra.mxu0 0.0
        %527 = vmatpush.xpose.msra.mxu0 0.0
        %528 = vmatpush.xpose.msra.mxu0 0.0
        %529 = vmatpush.xpose.msra.mxu0 0.0
        %530 = vmatpush.xpose.msra.mxu0 0.0
        %531 = vmatpush.xpose.msra.mxu0 %v514
        %532 = vmatmul.f32.gmra.mxu0 %v511
        %v533 = vpop.f32.mrf.mxu0
        %v534 = vadd.f32 %v428, %v533
        %535 = vdwg.mxu0
        %v536 = vsel %vm509, %v534, -inf
        %537 = vmax.xlane.f32.xlu0 %v536
        %v538 = vpop.xlane.xlu0 %537
        %v539 = vsub.f32 %v534, %v538
        %v540 = vmul.f32 %v539, 1.442695
        %v541 = vpow.pop %v540
        %v542 = vsel %vm509, %v541, 0.0
        %543 = vadd.xlane.f32.xlu0 %v542
        %v544 = vpop.xlane.xlu0 %543
        %v545 = vrcp.pop %v544
        %v546 = vmul.f32 %v544, %v545
        %v547 = vsub.f32 1.0, %v546
        %v548 = vmul.f32 %v545, %v547
        %v549 = vadd.f32 %v545, %v548
        %vm550 = vweird.f32 %v544
        %vm551 = vweird.f32 %v545
        %vm552 = vmor %vm550, %vm551
        %v553 = vsel %vm552, %v545, %v549
        %v554 = vand.u32 2147483647, %v544
        %vm555 = vcmp.eq.f32.partialorder %v554, 8.507059e+37
        %v556 = vand.u32 %v544, 2147483648
        %v557 = vor.u32 1.1754944e-38, %v556
        %v558 = vsel %vm555, %v557, %v553
        %v559 = vmul.f32 %v541, %v558
        %v561 = vsel %vm509, %v559, 0
        %563 = vmatpush.msra.mxu0 0.0
        %564 = vmatpush.msra.mxu0 0.0
        %565 = vmatpush.msra.mxu0 0.0
        %566 = vmatpush.msra.mxu0 0.0
        %567 = vmatpush.msra.mxu0 0.0
        %568 = vmatpush.msra.mxu0 0.0
        %569 = vmatpush.msra.mxu0 0.0
        %570 = vmatpush.msra.mxu0 0.0
        %571 = vmatpush.msra.mxu0 0.0
        %572 = vmatpush.msra.mxu0 0.0
        %573 = vmatpush.msra.mxu0 0.0
        %574 = vmatpush.msra.mxu0 0.0
        %575 = vmatpush.msra.mxu0 0.0
        %576 = vmatpush.msra.mxu0 0.0
        %577 = vmatpush.msra.mxu0 0.0
        %578 = vmatpush.msra.mxu0 %v507
        %579 = vmatmul.f32.gmra.mxu0 %v561
        %v580 = vpop.f32.mrf.mxu0
        %v581 = vadd.f32 0.0, %v580
        %582 = vdwg.mxu0
        %583 = vrot.lane.b32.xlu0 %v468, 120
        %v584 = vpop.permute.xlu0 %583
        %585 = vrot.lane.b32.xlu0 %v487, 120
        %v586 = vpop.permute.xlu0 %585
        %v587 = vsel %vm509, %v584, 0
        %v589 = vsel %vm509, %v586, 0
        %591 = vmatpush.xpose.msra.mxu0 0.0
        %592 = vmatpush.xpose.msra.mxu0 0.0
        %593 = vmatpush.xpose.msra.mxu0 0.0
        %594 = vmatpush.xpose.msra.mxu0 0.0
        %595 = vmatpush.xpose.msra.mxu0 0.0
        %596 = vmatpush.xpose.msra.mxu0 0.0
        %597 = vmatpush.xpose.msra.mxu0 0.0
        %598 = vmatpush.xpose.msra.mxu0 0.0
        %599 = vmatpush.xpose.msra.mxu0 0.0
        %600 = vmatpush.xpose.msra.mxu0 0.0
        %601 = vmatpush.xpose.msra.mxu0 0.0
        %602 = vmatpush.xpose.msra.mxu0 0.0
        %603 = vmatpush.xpose.msra.mxu0 0.0
        %604 = vmatpush.xpose.msra.mxu0 0.0
        %605 = vmatpush.xpose.msra.mxu0 0.0
        %606 = vmatpush.xpose.msra.mxu0 %v589
        %607 = vmatmul.f32.gmra.mxu0 %v587
        %v608 = vpop.f32.mrf.mxu0
        %v609 = vadd.f32 %v428, %v608
        %610 = vdwg.mxu0
        %v611 = vsel %vm509, %v609, -inf
        %612 = vmax.xlane.f32.xlu0 %v611
        %v613 = vpop.xlane.xlu0 %612
        %v614 = vsub.f32 %v609, %v613
        %v615 = vmul.f32 %v614, 1.442695
        %v616 = vpow.pop %v615
        %v617 = vsel %vm509, %v616, 0.0
        %618 = vadd.xlane.f32.xlu0 %v617
        %v619 = vpop.xlane.xlu0 %618
        %v620 = vrcp.pop %v619
        %v621 = vmul.f32 %v619, %v620
        %v622 = vsub.f32 1.0, %v621
        %v623 = vmul.f32 %v620, %v622
        %v624 = vadd.f32 %v620, %v623
        %vm625 = vweird.f32 %v619
        %vm626 = vweird.f32 %v620
        %vm627 = vmor %vm625, %vm626
        %v628 = vsel %vm627, %v620, %v624
        %v629 = vand.u32 2147483647, %v619
        %vm630 = vcmp.eq.f32.partialorder %v629, 8.507059e+37
        %v631 = vand.u32 %v619, 2147483648
        %v632 = vor.u32 1.1754944e-38, %v631
        %v633 = vsel %vm630, %v632, %v628
        %v634 = vmul.f32 %v616, %v633
        %636 = vrot.lane.b32.xlu0 %v507, 120
        %v637 = vpop.permute.xlu0 %636
        %v640 = vsel %vm509, %v634, 0
        %642 = vmatpush.msra.mxu0 0.0
        %643 = vmatpush.msra.mxu0 0.0
        %644 = vmatpush.msra.mxu0 0.0
        %645 = vmatpush.msra.mxu0 0.0
        %646 = vmatpush.msra.mxu0 0.0
        %647 = vmatpush.msra.mxu0 0.0
        %648 = vmatpush.msra.mxu0 0.0
        %649 = vmatpush.msra.mxu0 0.0
        %650 = vmatpush.msra.mxu0 0.0
        %651 = vmatpush.msra.mxu0 0.0
        %652 = vmatpush.msra.mxu0 0.0
        %653 = vmatpush.msra.mxu0 0.0
        %654 = vmatpush.msra.mxu0 0.0
        %655 = vmatpush.msra.mxu0 0.0
        %656 = vmatpush.msra.mxu0 0.0
        %657 = vmatpush.msra.mxu0 %v637
        %658 = vmatmul.f32.gmra.mxu0 %v640
        %v659 = vpop.f32.mrf.mxu0
        %v660 = vadd.f32 0.0, %v659
        %661 = vdwg.mxu0
        %v663 = vsel %vm509, %v660, 0
        %665 = vmatpush.msra.mxu0 0.0
        %666 = vmatpush.msra.mxu0 0.0
        %667 = vmatpush.msra.mxu0 0.0
        %668 = vmatpush.msra.mxu0 0.0
        %669 = vmatpush.msra.mxu0 0.0
        %670 = vmatpush.msra.mxu0 0.0
        %671 = vmatpush.msra.mxu0 0.0
        %672 = vmatpush.msra.mxu0 0.0
        %673 = vmatpush.msra.mxu0 0.0
        %674 = vmatpush.msra.mxu0 0.0
        %675 = vmatpush.msra.mxu0 0.0
        %676 = vmatpush.msra.mxu0 0.0
        %677 = vmatpush.msra.mxu0 0.0
        %678 = vmatpush.msra.mxu0 0.0
        %679 = vmatpush.msra.mxu0 0.0
        %680 = vmatpush.msra.mxu0 %v442
        %681 = vmatmul.f32.gmra.mxu0 %v663
        %v682 = vpop.f32.mrf.mxu0
        %v683 = vadd.f32 0.0, %v682
        %684 = vdwg.mxu0
        %v686 = vsel %vm509, %v581, 0
        %688 = vmatpush.msra.mxu0 0.0
        %689 = vmatpush.msra.mxu0 0.0
        %690 = vmatpush.msra.mxu0 0.0
        %691 = vmatpush.msra.mxu0 0.0
        %692 = vmatpush.msra.mxu0 0.0
        %693 = vmatpush.msra.mxu0 0.0
        %694 = vmatpush.msra.mxu0 0.0
        %695 = vmatpush.msra.mxu0 0.0
        %696 = vmatpush.msra.mxu0 0.0
        %697 = vmatpush.msra.mxu0 0.0
        %698 = vmatpush.msra.mxu0 0.0
        %699 = vmatpush.msra.mxu0 0.0
        %700 = vmatpush.msra.mxu0 0.0
        %701 = vmatpush.msra.mxu0 0.0
        %702 = vmatpush.msra.mxu0 0.0
        %703 = vmatpush.msra.mxu0 %v441
        %704 = vmatmul.f32.gmra.mxu0 %v686
        %v705 = vpop.f32.mrf.mxu0
        %v706 = vadd.f32 %v683, %v705
        %707 = vdwg.mxu0
        %708 = vrot.lane.b32.xlu0 %v468, 112
        %v709 = vpop.permute.xlu0 %708
        %710 = vrot.lane.b32.xlu0 %v487, 112
        %v711 = vpop.permute.xlu0 %710
        %v712 = vsel %vm509, %v709, 0
        %v714 = vsel %vm509, %v711, 0
        %716 = vmatpush.xpose.msra.mxu0 0.0
        %717 = vmatpush.xpose.msra.mxu0 0.0
        %718 = vmatpush.xpose.msra.mxu0 0.0
        %719 = vmatpush.xpose.msra.mxu0 0.0
        %720 = vmatpush.xpose.msra.mxu0 0.0
        %721 = vmatpush.xpose.msra.mxu0 0.0
        %722 = vmatpush.xpose.msra.mxu0 0.0
        %723 = vmatpush.xpose.msra.mxu0 0.0
        %724 = vmatpush.xpose.msra.mxu0 0.0
        %725 = vmatpush.xpose.msra.mxu0 0.0
        %726 = vmatpush.xpose.msra.mxu0 0.0
        %727 = vmatpush.xpose.msra.mxu0 0.0
        %728 = vmatpush.xpose.msra.mxu0 0.0
        %729 = vmatpush.xpose.msra.mxu0 0.0
        %730 = vmatpush.xpose.msra.mxu0 0.0
        %731 = vmatpush.xpose.msra.mxu0 %v714
        %732 = vmatmul.f32.gmra.mxu0 %v712
        %v733 = vpop.f32.mrf.mxu0
        %v734 = vadd.f32 %v428, %v733
        %735 = vdwg.mxu0
        %v736 = vsel %vm509, %v734, -inf
        %737 = vmax.xlane.f32.xlu0 %v736
        %v738 = vpop.xlane.xlu0 %737
        %v739 = vsub.f32 %v734, %v738
        %v740 = vmul.f32 %v739, 1.442695
        %v741 = vpow.pop %v740
        %v742 = vsel %vm509, %v741, 0.0
        %743 = vadd.xlane.f32.xlu0 %v742
        %v744 = vpop.xlane.xlu0 %743
        %v745 = vrcp.pop %v744
        %v746 = vmul.f32 %v744, %v745
        %v747 = vsub.f32 1.0, %v746
        %v748 = vmul.f32 %v745, %v747
        %v749 = vadd.f32 %v745, %v748
        %vm750 = vweird.f32 %v744
        %vm751 = vweird.f32 %v745
        %vm752 = vmor %vm750, %vm751
        %v753 = vsel %vm752, %v745, %v749
        %v754 = vand.u32 2147483647, %v744
        %vm755 = vcmp.eq.f32.partialorder %v754, 8.507059e+37
        %v756 = vand.u32 %v744, 2147483648
        %v757 = vor.u32 1.1754944e-38, %v756
        %v758 = vsel %vm755, %v757, %v753
        %v759 = vmul.f32 %v741, %v758
        %760 = vrot.lane.b32.xlu0 %v507, 112
        %v761 = vpop.permute.xlu0 %760
        %v764 = vsel %vm509, %v759, 0
        %766 = vmatpush.msra.mxu0 0.0
        %767 = vmatpush.msra.mxu0 0.0
        %768 = vmatpush.msra.mxu0 0.0
        %769 = vmatpush.msra.mxu0 0.0
        %770 = vmatpush.msra.mxu0 0.0
        %771 = vmatpush.msra.mxu0 0.0
        %772 = vmatpush.msra.mxu0 0.0
        %773 = vmatpush.msra.mxu0 0.0
        %774 = vmatpush.msra.mxu0 0.0
        %775 = vmatpush.msra.mxu0 0.0
        %776 = vmatpush.msra.mxu0 0.0
        %777 = vmatpush.msra.mxu0 0.0
        %778 = vmatpush.msra.mxu0 0.0
        %779 = vmatpush.msra.mxu0 0.0
        %780 = vmatpush.msra.mxu0 0.0
        %781 = vmatpush.msra.mxu0 %v761
        %782 = vmatmul.f32.gmra.mxu0 %v764
        %v783 = vpop.f32.mrf.mxu0
        %v784 = vadd.f32 0.0, %v783
        %785 = vdwg.mxu0
        %v787 = vsel %vm509, %v784, 0
        %789 = vmatpush.msra.mxu0 0.0
        %790 = vmatpush.msra.mxu0 0.0
        %791 = vmatpush.msra.mxu0 0.0
        %792 = vmatpush.msra.mxu0 0.0
        %793 = vmatpush.msra.mxu0 0.0
        %794 = vmatpush.msra.mxu0 0.0
        %795 = vmatpush.msra.mxu0 0.0
        %796 = vmatpush.msra.mxu0 0.0
        %797 = vmatpush.msra.mxu0 0.0
        %798 = vmatpush.msra.mxu0 0.0
        %799 = vmatpush.msra.mxu0 0.0
        %800 = vmatpush.msra.mxu0 0.0
        %801 = vmatpush.msra.mxu0 0.0
        %802 = vmatpush.msra.mxu0 0.0
        %803 = vmatpush.msra.mxu0 0.0
        %804 = vmatpush.msra.mxu0 %v443
        %805 = vmatmul.f32.gmra.mxu0 %v787
        %v806 = vpop.f32.mrf.mxu0
        %v807 = vadd.f32 0.0, %v806
        %808 = vdwg.mxu0
        %v809 = vadd.f32 %v706, %v807
        %810 = vrot.lane.b32.xlu0 %v468, 104
        %v811 = vpop.permute.xlu0 %810
        %812 = vrot.lane.b32.xlu0 %v487, 104
        %v813 = vpop.permute.xlu0 %812
        %v814 = vsel %vm509, %v811, 0
        %v816 = vsel %vm509, %v813, 0
        %818 = vmatpush.xpose.msra.mxu0 0.0
        %819 = vmatpush.xpose.msra.mxu0 0.0
        %820 = vmatpush.xpose.msra.mxu0 0.0
        %821 = vmatpush.xpose.msra.mxu0 0.0
        %822 = vmatpush.xpose.msra.mxu0 0.0
        %823 = vmatpush.xpose.msra.mxu0 0.0
        %824 = vmatpush.xpose.msra.mxu0 0.0
        %825 = vmatpush.xpose.msra.mxu0 0.0
        %826 = vmatpush.xpose.msra.mxu0 0.0
        %827 = vmatpush.xpose.msra.mxu0 0.0
        %828 = vmatpush.xpose.msra.mxu0 0.0
        %829 = vmatpush.xpose.msra.mxu0 0.0
        %830 = vmatpush.xpose.msra.mxu0 0.0
        %831 = vmatpush.xpose.msra.mxu0 0.0
        %832 = vmatpush.xpose.msra.mxu0 0.0
        %833 = vmatpush.xpose.msra.mxu0 %v816
        %834 = vmatmul.f32.gmra.mxu0 %v814
        %v835 = vpop.f32.mrf.mxu0
        %v836 = vadd.f32 %v428, %v835
        %837 = vdwg.mxu0
        %v838 = vsel %vm509, %v836, -inf
        %839 = vmax.xlane.f32.xlu0 %v838
        %v840 = vpop.xlane.xlu0 %839
        %v841 = vsub.f32 %v836, %v840
        %v842 = vmul.f32 %v841, 1.442695
        %v843 = vpow.pop %v842
        %v844 = vsel %vm509, %v843, 0.0
        %845 = vadd.xlane.f32.xlu0 %v844
        %v846 = vpop.xlane.xlu0 %845
        %v847 = vrcp.pop %v846
        %v848 = vmul.f32 %v846, %v847
        %v849 = vsub.f32 1.0, %v848
        %v850 = vmul.f32 %v847, %v849
        %v851 = vadd.f32 %v847, %v850
        %vm852 = vweird.f32 %v846
        %vm853 = vweird.f32 %v847
        %vm854 = vmor %vm852, %vm853
        %v855 = vsel %vm854, %v847, %v851
        %v856 = vand.u32 2147483647, %v846
        %vm857 = vcmp.eq.f32.partialorder %v856, 8.507059e+37
        %v858 = vand.u32 %v846, 2147483648
        %v859 = vor.u32 1.1754944e-38, %v858
        %v860 = vsel %vm857, %v859, %v855
        %v861 = vmul.f32 %v843, %v860
        %862 = vrot.lane.b32.xlu0 %v507, 104
        %v863 = vpop.permute.xlu0 %862
        %v866 = vsel %vm509, %v861, 0
        %868 = vmatpush.msra.mxu0 0.0
        %869 = vmatpush.msra.mxu0 0.0
        %870 = vmatpush.msra.mxu0 0.0
        %871 = vmatpush.msra.mxu0 0.0
        %872 = vmatpush.msra.mxu0 0.0
        %873 = vmatpush.msra.mxu0 0.0
        %874 = vmatpush.msra.mxu0 0.0
        %875 = vmatpush.msra.mxu0 0.0
        %876 = vmatpush.msra.mxu0 0.0
        %877 = vmatpush.msra.mxu0 0.0
        %878 = vmatpush.msra.mxu0 0.0
        %879 = vmatpush.msra.mxu0 0.0
        %880 = vmatpush.msra.mxu0 0.0
        %881 = vmatpush.msra.mxu0 0.0
        %882 = vmatpush.msra.mxu0 0.0
        %883 = vmatpush.msra.mxu0 %v863
        %884 = vmatmul.f32.gmra.mxu0 %v866
        %v885 = vpop.f32.mrf.mxu0
        %v886 = vadd.f32 0.0, %v885
        %887 = vdwg.mxu0
        %v889 = vsel %vm509, %v886, 0
        %891 = vmatpush.msra.mxu0 0.0
        %892 = vmatpush.msra.mxu0 0.0
        %893 = vmatpush.msra.mxu0 0.0
        %894 = vmatpush.msra.mxu0 0.0
        %895 = vmatpush.msra.mxu0 0.0
        %896 = vmatpush.msra.mxu0 0.0
        %897 = vmatpush.msra.mxu0 0.0
        %898 = vmatpush.msra.mxu0 0.0
        %899 = vmatpush.msra.mxu0 0.0
        %900 = vmatpush.msra.mxu0 0.0
        %901 = vmatpush.msra.mxu0 0.0
        %902 = vmatpush.msra.mxu0 0.0
        %903 = vmatpush.msra.mxu0 0.0
        %904 = vmatpush.msra.mxu0 0.0
        %905 = vmatpush.msra.mxu0 0.0
        %906 = vmatpush.msra.mxu0 %v444
        %907 = vmatmul.f32.gmra.mxu0 %v889
        %v908 = vpop.f32.mrf.mxu0
        %v909 = vadd.f32 0.0, %v908
        %910 = vdwg.mxu0
        %v911 = vadd.f32 %v809, %v909
        %v912 = vadd.f32 %v385, %v911
        %913 = vst.msk [vmem:[%s376] sm:$0xff] %vm388, %v912
        %s914 = sand.u32 %s211, 1
        %s915 = scalar_lea.sflag [#allocation4], %s914
        %s916 = sand.u32 %s211, 1
        %s917 = smul.addr %s916, 8
        %s918 = scalar_lea.vmem [#allocation10], %s917
        // Predicated region
        $region69: #{tpu_custom_call.1} parent=51 // pred_check
          %p919 = pneg %p221
        $region70: #{tpu_custom_call.1} parent=51 // pred_check_branch
          %921 = sbr.rel (%p919) target = $region72
        $region71: #{tpu_custom_call.1} parent=51 // pred_region
          %923 = vsyncadd %s915, 0
          %s924 = smul.addr %s25, 8
          %s925 = scalar_lea.hbm %s8, %s924
          %s927 = sshll.u32 %s918, 4
          %s928 = int_to_ptr.vmem [resolvable:$true] %s927
          %s929 = sshll.u32 %s925, 4
          %s930 = int_to_ptr.hbm [resolvable:$true] %s929
          %932 = dma.vmem_to_hbm [thread:$0]  %s928, 128, %s930, %s915
        $region72: #{tpu_custom_call.1} parent=51 // pred_fallthru
          _
      $region52: #{tpu_custom_call.1} parent=5 // pred_fallthru
        _
      %p933 = scmp.le.s32.totalorder 2, %s20
      // Predicated region
      $region73: #{tpu_custom_call.1} parent=5 // pred_check
        %p934 = pneg %p933
      $region74: #{tpu_custom_call.1} parent=5 // pred_check_branch
        %936 = sbr.rel (%p934) target = $region76
      $region75: #{tpu_custom_call.1} parent=5 // pred_region
        %s937 = ssub.s32 %s20, 2
        // Predicated region
        $region77: #{tpu_custom_call.1} parent=75 // pred_check
          %p938 = pneg %p227
        $region78: #{tpu_custom_call.1} parent=75 // pred_check_branch
          %940 = sbr.rel (%p938) target = $region80
        $region79: #{tpu_custom_call.1} parent=75 // pred_region
          %s941 = sand.u32 %s212, 1
          %s942 = scalar_lea.sflag [#allocation4], %s941
          %s943 = sand.u32 %s212, 1
          %s944 = smul.addr %s943, 8
          %s945 = scalar_lea.vmem [#allocation10], %s944
          %947 = dma.done %s942, 128
        $region80: #{tpu_custom_call.1} parent=75 // pred_fallthru
          _
      $region76: #{tpu_custom_call.1} parent=5 // pred_fallthru
        _
    $region6: #{tpu_custom_call.1} parent=1 // loop_footer
      %s24 = sadd.s32 1, %s20
    $region7: #{tpu_custom_call.1} parent=1 // loop_footer_branch
      %19 = sbr.rel target = $region3
    $region8: #{tpu_custom_call.1} parent=1 // loop_exit
      _
    %948 = vsyncpa [#allocation3], 1
    %s949 = scalar_lea.sflag [#allocation3], 1
    %950 = vsyncpa %s949, 1
    %951 = vsyncpa [#allocation6], 1
    %952 = vsyncpa [#allocation9], 1
    %953 = vsyncpa [#allocation4], 1
    %s954 = scalar_lea.sflag [#allocation4], 1
    %955 = vsyncpa %s954, 1

</llo_original>
